<compile_context>
chip_gen: v7x
topology: tpu7x:2x2x1
jax: 0.10.0
libtpu: 0.0.40
codegen_flags: <defaults>
</compile_context>

<pallas_src>
import jax
import jax.numpy as jnp
from jax.experimental import pallas as pl
from jax.experimental.pallas import tpu as pltpu


def mlp_kernel(xT_ref, w1_ref, b1_ref, w2_ref, b2_ref, w3_ref, b3_ref, o_ref):
    # xT_ref: (9, TM) bf16   w1: (64, 9)   w2: (64, 64)   w3: (1, 64)  (all bf16)
    # b1/b2: (64, 1) f32 VMEM, b3: (1, 1) f32 SMEM scalar. o_ref: (1, TM) f32.
    xT = xT_ref[...]
    h1 = jnp.dot(w1_ref[...], xT, preferred_element_type=jnp.float32)      # (64, TM)
    h1 = jnp.maximum(h1 + b1_ref[...], 0.0).astype(jnp.bfloat16)
    h2 = jnp.dot(w2_ref[...], h1, preferred_element_type=jnp.float32)      # (64, TM)
    h2 = jnp.maximum(h2 + b2_ref[...], 0.0).astype(jnp.bfloat16)
    y = jnp.dot(w3_ref[...], h2, preferred_element_type=jnp.float32)       # (1, TM)
    o_ref[...] = (y + b3_ref[0, 0]).astype(o_ref.dtype)


def regression_nn_forward(x, params, *, tm=2048):
    """x: (B, 9) f32. params in PyTorch layout: W (out,in), b (out,)."""
    w1, b1, w2, b2, w3, b3 = params
    B = x.shape[0]

    # Tile size: multiple of 128 (lane axis), capped at `tm`; pad batch to it.
    lane = 128
    TM = min(tm, ((B + lane - 1) // lane) * lane)
    B_pad = ((B + TM - 1) // TM) * TM
    grid = (B_pad // TM,)

    # Wrapper-side layout plumbing: transpose batch onto lanes, pad, cast bf16.
    xT = jnp.zeros((9, B_pad), jnp.bfloat16).at[:, :B].set(
        x.T.astype(jnp.bfloat16))
    w1b = w1.astype(jnp.bfloat16)                       # (64, 9)
    w2b = w2.astype(jnp.bfloat16)                       # (64, 64)
    w3b = w3.astype(jnp.bfloat16)                       # (1, 64)
    b1c = b1.reshape(64, 1).astype(jnp.float32)
    b2c = b2.reshape(64, 1).astype(jnp.float32)
    b3c = b3.reshape(1, 1).astype(jnp.float32)

    out = pl.pallas_call(
        mlp_kernel,
        out_shape=jax.ShapeDtypeStruct((1, B_pad), jnp.float32),
        grid=grid,
        in_specs=[
            pl.BlockSpec((9, TM), lambda i: (0, i)),            # x stream
            pl.BlockSpec((64, 9), lambda i: (0, 0)),            # W1 resident
            pl.BlockSpec((64, 1), lambda i: (0, 0)),            # b1 resident
            pl.BlockSpec((64, 64), lambda i: (0, 0)),           # W2 resident
            pl.BlockSpec((64, 1), lambda i: (0, 0)),            # b2 resident
            pl.BlockSpec((1, 64), lambda i: (0, 0)),            # W3 resident
            pl.BlockSpec(memory_space=pltpu.MemorySpace.SMEM),  # b3 scalar
        ],
        out_specs=pl.BlockSpec((1, TM), lambda i: (0, i)),      # lane-dense out
        compiler_params=pltpu.CompilerParams(
            dimension_semantics=("parallel",)),                 # v7x: 2 TCs
    )(xT, w1b, b1c, w2b, b2c, w3b, b3c)

    return out[:, :B].T                                          # (B, 1)


def init_params(key):
    # PyTorch nn.Linear default init: U(-1/sqrt(fan_in), 1/sqrt(fan_in)),
    # weights stored PyTorch-native as (out, in), biases as (out,).
    def linear(key, fan_in, fan_out):
        kw, kb = jax.random.split(key)
        bound = 1.0 / (fan_in ** 0.5)
        w = jax.random.uniform(kw, (fan_out, fan_in), jnp.float32, -bound, bound)
        b = jax.random.uniform(kb, (fan_out,), jnp.float32, -bound, bound)
        return w, b

    k1, k2, k3 = jax.random.split(key, 3)
    w1, b1 = linear(k1, 9, 64)
    w2, b2 = linear(k2, 64, 64)
    w3, b3 = linear(k3, 64, 1)
    return w1, b1, w2, b2, w3, b3


def reference_forward(x, params):
    # Pure-JAX reference mirroring the kernel numerics: bf16 dot inputs,
    # f32 accumulation, f32 bias-add / ReLU.
    w1, b1, w2, b2, w3, b3 = params
    h = jnp.dot(x.astype(jnp.bfloat16), w1.astype(jnp.bfloat16).T,
                preferred_element_type=jnp.float32) + b1
    h = jnp.maximum(h, 0.0).astype(jnp.bfloat16)
    h = jnp.dot(h, w2.astype(jnp.bfloat16).T,
                preferred_element_type=jnp.float32) + b2
    h = jnp.maximum(h, 0.0).astype(jnp.bfloat16)
    y = jnp.dot(h, w3.astype(jnp.bfloat16).T,
                preferred_element_type=jnp.float32) + b3
    return y


if __name__ == "__main__":
    key = jax.random.PRNGKey(0)
    kx, kp = jax.random.split(key)

    B = 8
    x = jax.random.normal(kx, (B, 9), jnp.float32)
    params = init_params(kp)

    out = regression_nn_forward(x, params)
    out = jax.block_until_ready(out)

    ref = reference_forward(x, params)
    assert out.shape == (B, 1)
    assert jnp.allclose(out, ref, atol=1e-3, rtol=1e-3), float(
        jnp.max(jnp.abs(out - ref)))

    print("KERNEL_OK")
</pallas_src>

<mosaic_0001>
module attributes {stable_mosaic.version = 11 : i64} {
  func.func @mlp_kernel(%arg0: i32, %arg1: memref<9x128xbf16, #tpu.memory_space<vmem>>, %arg2: memref<64x9xbf16, #tpu.memory_space<vmem>>, %arg3: memref<64x1xf32, #tpu.memory_space<vmem>>, %arg4: memref<64x64xbf16, #tpu.memory_space<vmem>>, %arg5: memref<64x1xf32, #tpu.memory_space<vmem>>, %arg6: memref<1x64xbf16, #tpu.memory_space<vmem>>, %arg7: memref<1x1xf32, #tpu.memory_space<smem>>, %arg8: memref<1x128xf32, #tpu.memory_space<vmem>>) attributes {dimension_semantics = [#tpu.dimension_semantics<parallel>], iteration_bounds = array<i64: 1>, scalar_prefetch = 0 : i64, scratch_operands = 0 : i64, tpu.core_type = #tpu.core_type<tc>, window_params = [{transform_indices = @transform_0, window_bounds = array<i64: 9, 128>}, {pipeline_mode = #tpu.pipeline_mode<synchronous>, transform_indices = @transform_1, window_bounds = array<i64: 64, 9>}, {pipeline_mode = #tpu.pipeline_mode<synchronous>, transform_indices = @transform_2, window_bounds = array<i64: 64, 1>}, {pipeline_mode = #tpu.pipeline_mode<synchronous>, transform_indices = @transform_3, window_bounds = array<i64: 64, 64>}, {pipeline_mode = #tpu.pipeline_mode<synchronous>, transform_indices = @transform_4, window_bounds = array<i64: 64, 1>}, {pipeline_mode = #tpu.pipeline_mode<synchronous>, transform_indices = @transform_5, window_bounds = array<i64: 1, 64>}, {transform_indices = @transform_6, window_bounds = array<i64: 1, 1>}, {transform_indices = @transform_7, window_bounds = array<i64: 1, 128>}]} {
    %c0 = arith.constant 0 : index
    %c0_0 = arith.constant 0 : index
    %0 = vector.load %arg1[%c0, %c0_0] : memref<9x128xbf16, #tpu.memory_space<vmem>>, vector<9x128xbf16>
    %c0_1 = arith.constant 0 : index
    %c0_2 = arith.constant 0 : index
    %1 = vector.load %arg2[%c0_1, %c0_2] : memref<64x9xbf16, #tpu.memory_space<vmem>>, vector<64x9xbf16>
    %cst = arith.constant dense<0.000000e+00> : vector<64x128xf32>
    %2 = tpu.matmul %1, %0, %cst {dimension_numbers = #tpu.dot_dimension_numbers<[1], [0], [0], [1], [0, 0, 1, 1], [], []>} : vector<64x9xbf16>, vector<9x128xbf16>, vector<64x128xf32> -> vector<64x128xf32>
    %c0_3 = arith.constant 0 : index
    %c0_4 = arith.constant 0 : index
    %3 = vector.load %arg3[%c0_3, %c0_4] : memref<64x1xf32, #tpu.memory_space<vmem>>, vector<64x1xf32>
    %4 = vector.broadcast %3 : vector<64x1xf32> to vector<64x128xf32>
    %5 = arith.addf %2, %4 : vector<64x128xf32>
    %cst_5 = arith.constant 0.000000e+00 : f32
    %6 = vector.broadcast %cst_5 : f32 to vector<64x128xf32>
    %7 = arith.maximumf %5, %6 : vector<64x128xf32>
    %8 = arith.truncf %7 : vector<64x128xf32> to vector<64x128xbf16>
    %c0_6 = arith.constant 0 : index
    %c0_7 = arith.constant 0 : index
    %9 = vector.load %arg4[%c0_6, %c0_7] : memref<64x64xbf16, #tpu.memory_space<vmem>>, vector<64x64xbf16>
    %cst_8 = arith.constant dense<0.000000e+00> : vector<64x128xf32>
    %10 = tpu.matmul %9, %8, %cst_8 {dimension_numbers = #tpu.dot_dimension_numbers<[1], [0], [0], [1], [0, 0, 1, 1], [], []>} : vector<64x64xbf16>, vector<64x128xbf16>, vector<64x128xf32> -> vector<64x128xf32>
    %c0_9 = arith.constant 0 : index
    %c0_10 = arith.constant 0 : index
    %11 = vector.load %arg5[%c0_9, %c0_10] : memref<64x1xf32, #tpu.memory_space<vmem>>, vector<64x1xf32>
    %12 = vector.broadcast %11 : vector<64x1xf32> to vector<64x128xf32>
    %13 = arith.addf %10, %12 : vector<64x128xf32>
    %cst_11 = arith.constant 0.000000e+00 : f32
    %14 = vector.broadcast %cst_11 : f32 to vector<64x128xf32>
    %15 = arith.maximumf %13, %14 : vector<64x128xf32>
    %16 = arith.truncf %15 : vector<64x128xf32> to vector<64x128xbf16>
    %c0_12 = arith.constant 0 : index
    %c0_13 = arith.constant 0 : index
    %17 = vector.load %arg6[%c0_12, %c0_13] : memref<1x64xbf16, #tpu.memory_space<vmem>>, vector<1x64xbf16>
    %cst_14 = arith.constant dense<0.000000e+00> : vector<1x128xf32>
    %18 = tpu.matmul %17, %16, %cst_14 {dimension_numbers = #tpu.dot_dimension_numbers<[1], [0], [0], [1], [0, 0, 1, 1], [], []>} : vector<1x64xbf16>, vector<64x128xbf16>, vector<1x128xf32> -> vector<1x128xf32>
    %c0_15 = arith.constant 0 : index
    %c0_16 = arith.constant 0 : index
    %19 = memref.load %arg7[%c0_15, %c0_16] : memref<1x1xf32, #tpu.memory_space<smem>>
    %20 = vector.broadcast %19 : f32 to vector<1x128xf32>
    %21 = arith.addf %18, %20 : vector<1x128xf32>
    %c0_17 = arith.constant 0 : index
    %c0_18 = arith.constant 0 : index
    %22 = vector.load %arg8[%c0_17, %c0_18] : memref<1x128xf32, #tpu.memory_space<vmem>>, vector<1x128xf32>
    tpu.vector_store %arg8[%c0_17, %c0_18], %21 {strides = array<i32>} : memref<1x128xf32, #tpu.memory_space<vmem>>, vector<1x128xf32>,
    return
  }
  func.func @transform_0(%arg0: i32) -> (i32, i32) {
    %c0_i32 = arith.constant 0 : i32
    %c0_i32_0 = arith.constant 0 : i32
    return %c0_i32, %arg0 : i32, i32
  }
  func.func @transform_1(%arg0: i32) -> (i32, i32) {
    %c0_i32 = arith.constant 0 : i32
    %c0_i32_0 = arith.constant 0 : i32
    %c0_i32_1 = arith.constant 0 : i32
    return %c0_i32, %c0_i32_0 : i32, i32
  }
  func.func @transform_2(%arg0: i32) -> (i32, i32) {
    %c0_i32 = arith.constant 0 : i32
    %c0_i32_0 = arith.constant 0 : i32
    %c0_i32_1 = arith.constant 0 : i32
    return %c0_i32, %c0_i32_0 : i32, i32
  }
  func.func @transform_3(%arg0: i32) -> (i32, i32) {
    %c0_i32 = arith.constant 0 : i32
    %c0_i32_0 = arith.constant 0 : i32
    %c0_i32_1 = arith.constant 0 : i32
    return %c0_i32, %c0_i32_0 : i32, i32
  }
  func.func @transform_4(%arg0: i32) -> (i32, i32) {
    %c0_i32 = arith.constant 0 : i32
    %c0_i32_0 = arith.constant 0 : i32
    %c0_i32_1 = arith.constant 0 : i32
    return %c0_i32, %c0_i32_0 : i32, i32
  }
  func.func @transform_5(%arg0: i32) -> (i32, i32) {
    %c0_i32 = arith.constant 0 : i32
    %c0_i32_0 = arith.constant 0 : i32
    %c0_i32_1 = arith.constant 0 : i32
    return %c0_i32, %c0_i32_0 : i32, i32
  }
  func.func @transform_6(%arg0: i32) -> (i32, i32) {
    %c0_i32 = arith.constant 0 : i32
    %c0_i32_0 = arith.constant 0 : i32
    %c0_i32_1 = arith.constant 0 : i32
    return %c0_i32, %c0_i32_0 : i32, i32
  }
  func.func @transform_7(%arg0: i32) -> (i32, i32) {
    %c0_i32 = arith.constant 0 : i32
    %c0_i32_0 = arith.constant 0 : i32
    return %c0_i32, %arg0 : i32, i32
  }
}

</mosaic_0001>

<llo_original>
// kernel: tpu_custom_call.1
$region0: #{tpu_custom_call.1}
  #allocation0 [shape = 'u32[]', space=smem, size = 0x4, offset = 0x4, fixed_abs, tag = 'smem constant byte address 0x4 - core index']
  #allocation1 [shape = 'u32[144,128]{1,0:T(1,128)}', space=vmem, size = 0x12000, scoped, tag = 'internal scratch']
  #allocation2 [shape = 'f32[1,1]{1,0:T(1,128)S(6)}', space=smem, size = 0x200, scoped, tag = 'scoped memory for tpu_custom_call.1']
  %s0 = inlined_call_operand.vmem [shape: bf16[9,128], index: 0, kind: input, shape index: {}]
  %s1 = inlined_call_operand.vmem [shape: bf16[64,9], index: 1, kind: input, shape index: {}]
  %s2 = inlined_call_operand.vmem [shape: f32[64,1], index: 2, kind: input, shape index: {}]
  %s3 = inlined_call_operand.vmem [shape: bf16[64,64], index: 3, kind: input, shape index: {}]
  %s4 = inlined_call_operand.vmem [shape: f32[64,1], index: 4, kind: input, shape index: {}]
  %s5 = inlined_call_operand.vmem [shape: bf16[1,64], index: 5, kind: input, shape index: {}]
  %s6 = inlined_call_operand.<no memory space> [shape: f32[1,1], index: 6, kind: input, shape index: {}]
  %s7 = inlined_call_operand.hbm [shape: f32[1,128], index: 7, kind: output, shape index: {}]
  %s8 = sld [smem:[#allocation0]]
  $region38: #{tpu_custom_call.1} parent=0
    _
  %s10 = ssub.s32 1, %s8
  %s11 = scalar_select 0, %s10, %s8
  %12 = sst [smem:[#allocation2]] %s6
  $region1: #{tpu_custom_call.1} parent=0
    #allocation3 [shape = 'u8[512]{0}', space=vmem, size = 0x400, scoped, tag = 'output window, operand 0, single buffered']
    #allocation4 [shape = 's32[1]{0}', space=sflag, size = 0x4, scoped, tag = 'scoped memory for tpu_custom_call.1']
    %13 = vsyncpa [#allocation4], 0
    // Predicated region
    $region2: #{tpu_custom_call.1} parent=1 // pred_check
      _
    $region3: #{tpu_custom_call.1} parent=1 // pred_check_branch
      %15 = sbr.rel (0) target = $region5
    $region4: #{tpu_custom_call.1} parent=1 // pred_region
      _
    $region5: #{tpu_custom_call.1} parent=1 // pred_fallthru
      _
    // Predicated region
    $region6: #{tpu_custom_call.1} parent=1 // pred_check
      _
    $region7: #{tpu_custom_call.1} parent=1 // pred_check_branch
      %17 = sbr.rel (0) target = $region9
    $region8: #{tpu_custom_call.1} parent=1 // pred_region
      _
    $region9: #{tpu_custom_call.1} parent=1 // pred_fallthru
      _
    // Predicated region
    $region10: #{tpu_custom_call.1} parent=1 // pred_check
      _
    $region11: #{tpu_custom_call.1} parent=1 // pred_check_branch
      %19 = sbr.rel (0) target = $region13
    $region12: #{tpu_custom_call.1} parent=1 // pred_region
      _
    $region13: #{tpu_custom_call.1} parent=1 // pred_fallthru
      _
    // Predicated region
    $region14: #{tpu_custom_call.1} parent=1 // pred_check
      _
    $region15: #{tpu_custom_call.1} parent=1 // pred_check_branch
      %21 = sbr.rel (0) target = $region17
    $region16: #{tpu_custom_call.1} parent=1 // pred_region
      _
    $region17: #{tpu_custom_call.1} parent=1 // pred_fallthru
      _
    // Predicated region
    $region18: #{tpu_custom_call.1} parent=1 // pred_check
      _
    $region19: #{tpu_custom_call.1} parent=1 // pred_check_branch
      %23 = sbr.rel (0) target = $region21
    $region20: #{tpu_custom_call.1} parent=1 // pred_region
      _
    $region21: #{tpu_custom_call.1} parent=1 // pred_fallthru
      _
    // Predicated region
    $region22: #{tpu_custom_call.1} parent=1 // pred_check
      _
    $region23: #{tpu_custom_call.1} parent=1 // pred_check_branch
      %25 = sbr.rel (0) target = $region25
    $region24: #{tpu_custom_call.1} parent=1 // pred_region
      _
    $region25: #{tpu_custom_call.1} parent=1 // pred_fallthru
      _
    // Predicated region
    $region26: #{tpu_custom_call.1} parent=1 // pred_check
      _
    $region27: #{tpu_custom_call.1} parent=1 // pred_check_branch
      %27 = sbr.rel (0) target = $region29
    $region28: #{tpu_custom_call.1} parent=1 // pred_region
      _
    $region29: #{tpu_custom_call.1} parent=1 // pred_fallthru
      _
    %v29 = vld [vmem:[%s0] sm:$0xf]
    %v30 = vld [vmem:[%s0 + $0x4] sm:$0x1]
    %v31 = vld [vmem:[%s1] sm:$0xf]
    %v32 = vld [vmem:[%s1 + $0x4] sm:$0xf]
    %v33 = vld [vmem:[%s1 + $0x8] sm:$0xf]
    %v34 = vld [vmem:[%s1 + $0xc] sm:$0xf]
    %v35 = vld [vmem:[%s1 + $0x10] sm:$0xf]
    %v36 = vld [vmem:[%s1 + $0x14] sm:$0xf]
    %v37 = vld [vmem:[%s1 + $0x18] sm:$0xf]
    %v38 = vld [vmem:[%s1 + $0x1c] sm:$0xf]
    %v39 = vld [vmem:[%s2] sm:$0xff]
    %v40 = vld [vmem:[%s2 + $0x8] sm:$0xff]
    %v41 = vld [vmem:[%s2 + $0x10] sm:$0xff]
    %v42 = vld [vmem:[%s2 + $0x18] sm:$0xff]
    %v43 = vld [vmem:[%s2 + $0x20] sm:$0xff]
    %v44 = vld [vmem:[%s2 + $0x28] sm:$0xff]
    %v45 = vld [vmem:[%s2 + $0x30] sm:$0xff]
    %v46 = vld [vmem:[%s2 + $0x38] sm:$0xff]
    %48 = vset.pattern.permute.xlu0 0
    %49 = vperm.xlu0 %48, %v39
    %v50 = vpop.permute.xlu0 %49
    %53 = vset.pattern.permute.xlu0 0
    %54 = vperm.xlu0 %53, %v40
    %v55 = vpop.permute.xlu0 %54
    %58 = vset.pattern.permute.xlu0 0
    %59 = vperm.xlu0 %58, %v41
    %v60 = vpop.permute.xlu0 %59
    %63 = vset.pattern.permute.xlu0 0
    %64 = vperm.xlu0 %63, %v42
    %v65 = vpop.permute.xlu0 %64
    %68 = vset.pattern.permute.xlu0 0
    %69 = vperm.xlu0 %68, %v43
    %v70 = vpop.permute.xlu0 %69
    %73 = vset.pattern.permute.xlu0 0
    %74 = vperm.xlu0 %73, %v44
    %v75 = vpop.permute.xlu0 %74
    %78 = vset.pattern.permute.xlu0 0
    %79 = vperm.xlu0 %78, %v45
    %v80 = vpop.permute.xlu0 %79
    %83 = vset.pattern.permute.xlu0 0
    %84 = vperm.xlu0 %83, %v46
    %v85 = vpop.permute.xlu0 %84
    %v95 = vunpack.c.l.b16 %v31
    %v96 = vunpack.c.l.b16 %v32
    %v97 = vunpack.c.l.b16 %v33
    %v98 = vunpack.c.l.b16 %v34
    %v99 = vunpack.c.l.b16 %v35
    %v100 = vunpack.c.l.b16 %v36
    %v101 = vunpack.c.l.b16 %v37
    %v102 = vunpack.c.l.b16 %v38
    %v103 = vpack.c.b16 %v96, %v95
    %v104 = vpack.c.b16 %v98, %v97
    %v105 = vpack.c.b16 %v100, %v99
    %v106 = vpack.c.b16 %v102, %v101
    %v109 = vunpack.c.l.b16 %v29
    %v110 = vunpack.c.l.b16 %v30
    %v111 = vpack.c.b16 %v110, %v109
    %vm112 = vcmask 72704
    %v114 = vsel %vm112, %v103, 0
    %v117 = vsel %vm112, %v104, 0
    %v120 = vsel %vm112, %v105, 0
    %v123 = vsel %vm112, %v106, 0
    %vm125 = vcmask 1043456
    %vm126 = vcmask 1044480
    %v127 = vsel %vm125, 4294967295, 65535
    %v128 = vsel %vm126, %v127, 0
    %v130 = vand.u32 %v111, %v128
    %132 = vmatprep.subr.bf16.mxu0 0
    %133 = vmatpush1.bf16.msra.mxu0 %v130
    %134 = vmatprep.subr.bf16.mxu0 0
    %135 = vmatpush1.bf16.msra.mxu0 0
    %136 = vmatprep.subr.bf16.mxu0 0
    %137 = vmatpush1.bf16.msra.mxu0 0
    %138 = vmatprep.subr.bf16.mxu0 0
    %139 = vmatpush1.bf16.msra.mxu0 0
    %140 = vmatprep.subr.bf16.mxu0 0
    %141 = vmatpush1.bf16.msra.mxu0 0
    %142 = vmatprep.subr.bf16.mxu0 0
    %143 = vmatpush1.bf16.msra.mxu0 0
    %144 = vmatprep.subr.bf16.mxu0 0
    %145 = vmatpush1.bf16.msra.mxu0 0
    %146 = vmatprep.subr.bf16.mxu0 0
    %147 = vmatpush1.bf16.msra.mxu0 0
    %148 = vmatprep.subr.bf16.mxu0 0
    %149 = vmatpush1.bf16.msra.mxu0 0
    %150 = vmatprep.subr.bf16.mxu0 0
    %151 = vmatpush1.bf16.msra.mxu0 0
    %152 = vmatprep.subr.bf16.mxu0 0
    %153 = vmatpush1.bf16.msra.mxu0 0
    %154 = vmatprep.subr.bf16.mxu0 0
    %155 = vmatpush1.bf16.msra.mxu0 0
    %156 = vmatprep.subr.bf16.mxu0 0
    %157 = vmatpush1.bf16.msra.mxu0 0
    %158 = vmatprep.subr.bf16.mxu0 0
    %159 = vmatpush1.bf16.msra.mxu0 0
    %160 = vmatprep.subr.bf16.mxu0 0
    %161 = vmatpush1.bf16.msra.mxu0 0
    %162 = vmatprep.subr.bf16.mxu0 0
    %163 = vmatpush1.bf16.msra.mxu0 0
    %164 = vmatprep.mubr.bf16.mxu0 0
    %165 = vmatmul.mubr.bf16.gmra.mrb[0].mxu0 %v114
    %v166 = vpop.f32.mrb[0].mxu0
    %v167 = vadd.f32 %v50, %v166
    %v168 = vpop.f32.mrb[0].mxu0
    %v169 = vpop.f32.mrb[0].mxu0
    %v170 = vadd.f32 %v55, %v169
    %v171 = vpop.f32.mrb[0].mxu0
    %172 = vmatprep.mubr.bf16.mxu0 0
    %173 = vmatmul.mubr.bf16.gmra.mrb[0].mxu0 %v117
    %v174 = vpop.f32.mrb[0].mxu0
    %v175 = vadd.f32 %v60, %v174
    %v176 = vpop.f32.mrb[0].mxu0
    %v177 = vpop.f32.mrb[0].mxu0
    %v178 = vadd.f32 %v65, %v177
    %v179 = vpop.f32.mrb[0].mxu0
    %180 = vmatprep.mubr.bf16.mxu0 0
    %181 = vmatmul.mubr.bf16.gmra.mrb[0].mxu0 %v120
    %v182 = vpop.f32.mrb[0].mxu0
    %v183 = vadd.f32 %v70, %v182
    %v184 = vpop.f32.mrb[0].mxu0
    %v185 = vpop.f32.mrb[0].mxu0
    %v186 = vadd.f32 %v75, %v185
    %v187 = vpop.f32.mrb[0].mxu0
    %188 = vmatprep.mubr.bf16.mxu0 0
    %189 = vmatmul.mubr.bf16.gmra.mrb[0].mxu0 %v123
    %v190 = vpop.f32.mrb[0].mxu0
    %v191 = vadd.f32 %v80, %v190
    %v192 = vpop.f32.mrb[0].mxu0
    %v193 = vpop.f32.mrb[0].mxu0
    %v194 = vadd.f32 %v85, %v193
    %v195 = vpop.f32.mrb[0].mxu0
    %196 = vdwg.mxu0
    %v197 = vmax.f32 %v167, 0.0
    %v198 = vmax.f32 %v170, 0.0
    %v199 = vmax.f32 %v175, 0.0
    %v200 = vmax.f32 %v178, 0.0
    %v201 = vmax.f32 %v183, 0.0
    %v202 = vmax.f32 %v186, 0.0
    %v203 = vmax.f32 %v191, 0.0
    %v204 = vmax.f32 %v194, 0.0
    %v205 = vpack.c.bf16 %v198, %v197
    %v206 = vpack.c.bf16 %v200, %v199
    %v207 = vpack.c.bf16 %v202, %v201
    %v208 = vpack.c.bf16 %v204, %v203
    %v209 = vld [vmem:[%s3] sm:$0xf]
    %v210 = vld [vmem:[%s3 + $0x4] sm:$0xf]
    %v211 = vld [vmem:[%s3 + $0x8] sm:$0xf]
    %v212 = vld [vmem:[%s3 + $0xc] sm:$0xf]
    %v213 = vld [vmem:[%s3 + $0x10] sm:$0xf]
    %v214 = vld [vmem:[%s3 + $0x14] sm:$0xf]
    %v215 = vld [vmem:[%s3 + $0x18] sm:$0xf]
    %v216 = vld [vmem:[%s3 + $0x1c] sm:$0xf]
    %v217 = vld [vmem:[%s4] sm:$0xff]
    %v218 = vld [vmem:[%s4 + $0x8] sm:$0xff]
    %v219 = vld [vmem:[%s4 + $0x10] sm:$0xff]
    %v220 = vld [vmem:[%s4 + $0x18] sm:$0xff]
    %v221 = vld [vmem:[%s4 + $0x20] sm:$0xff]
    %v222 = vld [vmem:[%s4 + $0x28] sm:$0xff]
    %v223 = vld [vmem:[%s4 + $0x30] sm:$0xff]
    %v224 = vld [vmem:[%s4 + $0x38] sm:$0xff]
    %226 = vset.pattern.permute.xlu0 0
    %227 = vperm.xlu0 %226, %v217
    %v228 = vpop.permute.xlu0 %227
    %231 = vset.pattern.permute.xlu0 0
    %232 = vperm.xlu0 %231, %v218
    %v233 = vpop.permute.xlu0 %232
    %236 = vset.pattern.permute.xlu0 0
    %237 = vperm.xlu0 %236, %v219
    %v238 = vpop.permute.xlu0 %237
    %241 = vset.pattern.permute.xlu0 0
    %242 = vperm.xlu0 %241, %v220
    %v243 = vpop.permute.xlu0 %242
    %246 = vset.pattern.permute.xlu0 0
    %247 = vperm.xlu0 %246, %v221
    %v248 = vpop.permute.xlu0 %247
    %251 = vset.pattern.permute.xlu0 0
    %252 = vperm.xlu0 %251, %v222
    %v253 = vpop.permute.xlu0 %252
    %256 = vset.pattern.permute.xlu0 0
    %257 = vperm.xlu0 %256, %v223
    %v258 = vpop.permute.xlu0 %257
    %261 = vset.pattern.permute.xlu0 0
    %262 = vperm.xlu0 %261, %v224
    %v263 = vpop.permute.xlu0 %262
    %v273 = vunpack.c.l.b16 %v209
    %v274 = vunpack.c.l.b16 %v210
    %v275 = vunpack.c.l.b16 %v211
    %v276 = vunpack.c.l.b16 %v212
    %v277 = vunpack.c.l.b16 %v213
    %v278 = vunpack.c.l.b16 %v214
    %v279 = vunpack.c.l.b16 %v215
    %v280 = vunpack.c.l.b16 %v216
    %v281 = vpack.c.b16 %v274, %v273
    %v282 = vpack.c.b16 %v276, %v275
    %v283 = vpack.c.b16 %v278, %v277
    %v284 = vpack.c.b16 %v280, %v279
    %vm285 = vcmask 523264
    %v287 = vsel %vm285, %v281, 0
    %v290 = vsel %vm285, %v282, 0
    %v293 = vsel %vm285, %v283, 0
    %v296 = vsel %vm285, %v284, 0
    %298 = vmatprep.subr.bf16.mxu0 0
    %299 = vmatpush1.bf16.msra.mxu0 %v205
    %300 = vmatprep.subr.bf16.mxu0 0
    %301 = vmatpush1.bf16.msra.mxu0 %v206
    %302 = vmatprep.subr.bf16.mxu0 0
    %303 = vmatpush1.bf16.msra.mxu0 %v207
    %304 = vmatprep.subr.bf16.mxu0 0
    %305 = vmatpush1.bf16.msra.mxu0 %v208
    %306 = vmatprep.subr.bf16.mxu0 0
    %307 = vmatpush1.bf16.msra.mxu0 0
    %308 = vmatprep.subr.bf16.mxu0 0
    %309 = vmatpush1.bf16.msra.mxu0 0
    %310 = vmatprep.subr.bf16.mxu0 0
    %311 = vmatpush1.bf16.msra.mxu0 0
    %312 = vmatprep.subr.bf16.mxu0 0
    %313 = vmatpush1.bf16.msra.mxu0 0
    %314 = vmatprep.subr.bf16.mxu0 0
    %315 = vmatpush1.bf16.msra.mxu0 0
    %316 = vmatprep.subr.bf16.mxu0 0
    %317 = vmatpush1.bf16.msra.mxu0 0
    %318 = vmatprep.subr.bf16.mxu0 0
    %319 = vmatpush1.bf16.msra.mxu0 0
    %320 = vmatprep.subr.bf16.mxu0 0
    %321 = vmatpush1.bf16.msra.mxu0 0
    %322 = vmatprep.subr.bf16.mxu0 0
    %323 = vmatpush1.bf16.msra.mxu0 0
    %324 = vmatprep.subr.bf16.mxu0 0
    %325 = vmatpush1.bf16.msra.mxu0 0
    %326 = vmatprep.subr.bf16.mxu0 0
    %327 = vmatpush1.bf16.msra.mxu0 0
    %328 = vmatprep.subr.bf16.mxu0 0
    %329 = vmatpush1.bf16.msra.mxu0 0
    %330 = vmatprep.mubr.bf16.mxu0 0
    %331 = vmatmul.mubr.bf16.gmra.mrb[0].mxu0 %v287
    %v332 = vpop.f32.mrb[0].mxu0
    %v333 = vadd.f32 %v228, %v332
    %v334 = vpop.f32.mrb[0].mxu0
    %v335 = vpop.f32.mrb[0].mxu0
    %v336 = vadd.f32 %v233, %v335
    %v337 = vpop.f32.mrb[0].mxu0
    %338 = vmatprep.mubr.bf16.mxu0 0
    %339 = vmatmul.mubr.bf16.gmra.mrb[0].mxu0 %v290
    %v340 = vpop.f32.mrb[0].mxu0
    %v341 = vadd.f32 %v238, %v340
    %v342 = vpop.f32.mrb[0].mxu0
    %v343 = vpop.f32.mrb[0].mxu0
    %v344 = vadd.f32 %v243, %v343
    %v345 = vpop.f32.mrb[0].mxu0
    %346 = vmatprep.mubr.bf16.mxu0 0
    %347 = vmatmul.mubr.bf16.gmra.mrb[0].mxu0 %v293
    %v348 = vpop.f32.mrb[0].mxu0
    %v349 = vadd.f32 %v248, %v348
    %v350 = vpop.f32.mrb[0].mxu0
    %v351 = vpop.f32.mrb[0].mxu0
    %v352 = vadd.f32 %v253, %v351
    %v353 = vpop.f32.mrb[0].mxu0
    %354 = vmatprep.mubr.bf16.mxu0 0
    %355 = vmatmul.mubr.bf16.gmra.mrb[0].mxu0 %v296
    %v356 = vpop.f32.mrb[0].mxu0
    %v357 = vadd.f32 %v258, %v356
    %v358 = vpop.f32.mrb[0].mxu0
    %v359 = vpop.f32.mrb[0].mxu0
    %v360 = vadd.f32 %v263, %v359
    %v361 = vpop.f32.mrb[0].mxu0
    %362 = vdwg.mxu0
    %v363 = vmax.f32 %v333, 0.0
    %v364 = vmax.f32 %v336, 0.0
    %v365 = vmax.f32 %v341, 0.0
    %v366 = vmax.f32 %v344, 0.0
    %v367 = vmax.f32 %v349, 0.0
    %v368 = vmax.f32 %v352, 0.0
    %v369 = vmax.f32 %v357, 0.0
    %v370 = vmax.f32 %v360, 0.0
    %v371 = vpack.c.bf16 %v364, %v363
    %v372 = vpack.c.bf16 %v366, %v365
    %v373 = vpack.c.bf16 %v368, %v367
    %v374 = vpack.c.bf16 %v370, %v369
    %v375 = vld [vmem:[%s5] sm:$0x1]
    %s376 = sld [smem:[#allocation2]]
    %v377 = vstv %s376
    %v379 = vsel %vm285, %v375, 0
    %381 = vmatprep.subr.bf16.mxu0 0
    %382 = vmatpush1.bf16.msra.mxu0 %v371
    %383 = vmatprep.subr.bf16.mxu0 0
    %384 = vmatpush1.bf16.msra.mxu0 %v372
    %385 = vmatprep.subr.bf16.mxu0 0
    %386 = vmatpush1.bf16.msra.mxu0 %v373
    %387 = vmatprep.subr.bf16.mxu0 0
    %388 = vmatpush1.bf16.msra.mxu0 %v374
    %389 = vmatprep.subr.bf16.mxu0 0
    %390 = vmatpush1.bf16.msra.mxu0 0
    %391 = vmatprep.subr.bf16.mxu0 0
    %392 = vmatpush1.bf16.msra.mxu0 0
    %393 = vmatprep.subr.bf16.mxu0 0
    %394 = vmatpush1.bf16.msra.mxu0 0
    %395 = vmatprep.subr.bf16.mxu0 0
    %396 = vmatpush1.bf16.msra.mxu0 0
    %397 = vmatprep.subr.bf16.mxu0 0
    %398 = vmatpush1.bf16.msra.mxu0 0
    %399 = vmatprep.subr.bf16.mxu0 0
    %400 = vmatpush1.bf16.msra.mxu0 0
    %401 = vmatprep.subr.bf16.mxu0 0
    %402 = vmatpush1.bf16.msra.mxu0 0
    %403 = vmatprep.subr.bf16.mxu0 0
    %404 = vmatpush1.bf16.msra.mxu0 0
    %405 = vmatprep.subr.bf16.mxu0 0
    %406 = vmatpush1.bf16.msra.mxu0 0
    %407 = vmatprep.subr.bf16.mxu0 0
    %408 = vmatpush1.bf16.msra.mxu0 0
    %409 = vmatprep.subr.bf16.mxu0 0
    %410 = vmatpush1.bf16.msra.mxu0 0
    %411 = vmatprep.subr.bf16.mxu0 0
    %412 = vmatpush1.bf16.msra.mxu0 0
    %413 = vmatprep.mubr.bf16.mxu0 0
    %414 = vmatmul.mubr.bf16.gmra.mrb[0].mxu0 %v379
    %v415 = vpop.f32.mrb[0].mxu0
    %v416 = vadd.f32 %v377, %v415
    %v417 = vpop.f32.mrb[0].mxu0
    %v418 = vpop.f32.mrb[0].mxu0
    %v419 = vpop.f32.mrb[0].mxu0
    %420 = vdwg.mxu0
    %421 = vst [vmem:[#allocation3] sm:$0x1] %v416
    // Predicated region
    $region30: #{tpu_custom_call.1} parent=1 // pred_check
      _
    $region31: #{tpu_custom_call.1} parent=1 // pred_check_branch
      %423 = sbr.rel (0) target = $region33
    $region32: #{tpu_custom_call.1} parent=1 // pred_region
      %s425 = ssub.s32 16, 16
      %426 = vsyncadd [#allocation4], %s425
      %s428 = sshll.u32 [#allocation3], 4
      %s429 = int_to_ptr.vmem [resolvable:$true] %s428
      %431 = dma.vmem_to_hbm [thread:$0]  %s429, 16, %s7, [#allocation4]
    $region33: #{tpu_custom_call.1} parent=1 // pred_fallthru
      _
    // Predicated region
    $region34: #{tpu_custom_call.1} parent=1 // pred_check
      _
    $region35: #{tpu_custom_call.1} parent=1 // pred_check_branch
      %433 = sbr.rel (0) target = $region37
    $region36: #{tpu_custom_call.1} parent=1 // pred_region
      %434 = dma.done [#allocation4], 16
    $region37: #{tpu_custom_call.1} parent=1 // pred_fallthru
      _
    %435 = vsyncpa [#allocation4], 1

</llo_original>
